<compile_context>
chip_gen: v7x
topology: tpu7x:2x2x1
jax: 0.10.0
libtpu: 0.0.40
codegen_flags: <defaults>
</compile_context>

<pallas_src>
import jax
import jax.numpy as jnp
from jax.experimental import pallas as pl
from jax.experimental.pallas import tpu as pltpu


def _round_up(x: int, m: int) -> int:
    return ((x + m - 1) // m) * m


# ---------------------------------------------------------------------------
# Kernel bodies
# ---------------------------------------------------------------------------

def _resident_linear_kernel(x_ref, w_ref, b_ref, o_ref):
    # x_ref : (TM, Dp) token tile
    # w_ref : (Dp, Dp) full pre-transposed weight (VMEM-resident: constant
    #         index_map => DMA'd once for the whole grid)
    # b_ref : (1, Dp)  bias (f32)
    # o_ref : (TM, Dp) output tile
    o_ref[...] = (
        jnp.dot(x_ref[...], w_ref[...], preferred_element_type=jnp.float32)
        + b_ref[...]
    ).astype(o_ref.dtype)


def _tiled_linear_kernel(x_ref, w_ref, b_ref, o_ref, acc_ref):
    # Fallback for weights too large to keep VMEM-resident.
    # grid = (M tiles, N tiles, K tiles); K is last and "arbitrary".
    # The wrapper guarantees num_programs(2) >= 2.
    k = pl.program_id(2)
    nk = pl.num_programs(2)
    partial = jnp.dot(x_ref[...], w_ref[...], preferred_element_type=jnp.float32)

    @pl.when(k == 0)
    def _():
        acc_ref[...] = partial

    @pl.when(jnp.logical_and(k > 0, k < nk - 1))
    def _():
        acc_ref[...] += partial

    @pl.when(k == nk - 1)
    def _():
        # Fold the last partial product and the bias straight into the output
        # tile: saves a TMxTN f32 accumulator store + reload per output tile
        # (matters most on v5e, which has a single vst slot per bundle).
        o_ref[...] = (acc_ref[...] + partial + b_ref[...]).astype(o_ref.dtype)


# ---------------------------------------------------------------------------
# Wrapper
# ---------------------------------------------------------------------------

_RESIDENT_W_LIMIT = 12 * 1024 * 1024   # max weight bytes for the resident path
_VMEM_BUDGET = 36 * 1024 * 1024        # design budget for all buffers
_VMEM_LIMIT = 48 * 1024 * 1024         # scoped limit handed to Mosaic (< v7x 64 MiB)


def hierarchical_substructure_forward(x, weight, bias):
    """x: (B, S, D); weight: (D, D) in nn.Linear (out, in) layout; bias: (D,).

    Compute dtype == x.dtype (pass bf16 x for a bf16 MXU path); accumulation
    is always f32; output keeps x.dtype.
    """
    B, S, D = x.shape
    M = B * S
    out_dtype = x.dtype
    cdt = jnp.dtype(x.dtype)
    in_item = cdt.itemsize
    out_item = jnp.dtype(out_dtype).itemsize

    # Lane-dense feature dim (multiple of 128) -> unmasked full-width stores.
    Dp = max(128, _round_up(D, 128))

    # --- operand prep -------------------------------------------------------
    x_flat = x.reshape(M, D)
    if Dp != D:
        # Only the feature axis is ever padded (one pass over x, and only for
        # non-128-aligned D).  The M axis is never padded.
        x_flat = jnp.pad(x_flat, ((0, 0), (0, Dp - D)))
        weight = jnp.pad(weight, ((0, Dp - D), (0, Dp - D)))
        bias = jnp.pad(bias, (0, Dp - D))
    # Pre-transpose once on the host so the contraction is a plain (M,K)x(K,N)
    # matmul -- no per-tile RHS transpose in front of the MXU.
    w_t = weight.T.astype(cdt)
    b2 = bias.reshape(1, Dp).astype(jnp.float32)

    w_bytes = Dp * Dp * in_item

    if w_bytes <= _RESIDENT_W_LIMIT:
        # ---- resident-weight path: grid over M tiles only -------------------
        # Budget conservatively assumes the weight could still be
        # double-buffered even though Buffered(1) keeps a single copy.
        per_row = Dp * 2 * (in_item + out_item)          # dbl-buffered x + out
        avail = _VMEM_BUDGET - 2 * w_bytes - 2 * Dp * 4
        tm_cap = min(2048, max(256, (avail // per_row) // 256 * 256))
        TM = M if M <= tm_cap else tm_cap                # ragged last block OK
        grid = (pl.cdiv(M, TM),)

        cost = pl.CostEstimate(
            flops=2 * M * Dp * Dp,
            transcendentals=0,
            bytes_accessed=(M * Dp * in_item             # x read once
                            + Dp * Dp * in_item          # weight read once
                            + M * Dp * out_item          # output write
                            + Dp * 4),                   # bias
        )

        def resident_call(single_buffer_const_operands: bool):
            mode = pl.Buffered(1) if single_buffer_const_operands else None
            return pl.pallas_call(
                _resident_linear_kernel,
                out_shape=jax.ShapeDtypeStruct((M, Dp), out_dtype),
                grid_spec=pltpu.PrefetchScalarGridSpec(
                    num_scalar_prefetch=0,
                    grid=grid,
                    in_specs=[
                        pl.BlockSpec((TM, Dp), lambda i: (i, 0)),
                        pl.BlockSpec((Dp, Dp), lambda i: (0, 0),
                                     pipeline_mode=mode),
                        pl.BlockSpec((1, Dp), lambda i: (0, 0),
                                     pipeline_mode=mode),
                    ],
                    out_specs=pl.BlockSpec((TM, Dp), lambda i: (i, 0)),
                ),
                compiler_params=pltpu.CompilerParams(
                    dimension_semantics=("parallel",),   # megacore splits M tiles
                    vmem_limit_bytes=_VMEM_LIMIT,
                ),
                cost_estimate=cost,
            )(x_flat, w_t, b2)

        try:
            # Single-buffer the grid-invariant weight/bias (they are DMA'd once).
            out_flat = resident_call(True)
        except Exception:
            # Safety net for jax versions where Buffered(1) is unsupported on
            # the main pallas_call pipeline; budget already tolerates 2 buffers.
            out_flat = resident_call(False)
    else:
        # ---- large-D fallback: classic (M, N, K) tiling ----------------------
        TN = TK = next(t for t in (512, 256, 128) if Dp % t == 0)
        TM = M if M <= 1024 else 1024
        nm, nn, nk = pl.cdiv(M, TM), Dp // TN, Dp // TK
        # w_bytes > _RESIDENT_W_LIMIT and TK <= 512  =>  nk >= 2, which
        # _tiled_linear_kernel relies on.
        grid = (nm, nn, nk)

        cost = pl.CostEstimate(
            flops=2 * M * Dp * Dp,
            transcendentals=0,
            bytes_accessed=(nn * M * Dp * in_item        # x re-read per N tile
                            + nm * Dp * Dp * in_item     # W re-read per M tile
                            + M * Dp * out_item          # output write
                            + nm * Dp * 4),              # bias
        )

        out_flat = pl.pallas_call(
            _tiled_linear_kernel,
            out_shape=jax.ShapeDtypeStruct((M, Dp), out_dtype),
            grid_spec=pltpu.PrefetchScalarGridSpec(
                num_scalar_prefetch=0,
                grid=grid,
                in_specs=[
                    pl.BlockSpec((TM, TK), lambda i, j, k: (i, k)),   # x tile
                    pl.BlockSpec((TK, TN), lambda i, j, k: (k, j)),   # W.T tile
                    pl.BlockSpec((1, TN), lambda i, j, k: (0, j)),    # bias
                ],
                out_specs=pl.BlockSpec((TM, TN), lambda i, j, k: (i, j)),
                scratch_shapes=[pltpu.VMEM((TM, TN), jnp.float32)],
            ),
            compiler_params=pltpu.CompilerParams(
                dimension_semantics=("parallel", "parallel", "arbitrary"),
                vmem_limit_bytes=_VMEM_LIMIT,
            ),
            cost_estimate=cost,
        )(x_flat, w_t, b2)

    if Dp != D:
        out_flat = out_flat[:, :D]
    return out_flat.reshape(B, S, D)


def _reference(x, weight, bias):
    # Exact module semantics: split, shared nn.Linear, concat.
    S = x.shape[1]
    half = S // 2
    r1 = x[:, :half, :] @ weight.T + bias
    r2 = x[:, half:, :] @ weight.T + bias
    return jnp.concatenate([r1, r2], axis=1)


if __name__ == "__main__":
    key = jax.random.PRNGKey(0)

    # ---- primary small-shape check (module-consistent shapes), f32 ---------
    B, S, D = 2, 8, 32
    kx, kw, kb = jax.random.split(key, 3)
    x = jax.random.normal(kx, (B, S, D), dtype=jnp.float32)
    bound = 1.0 / jnp.sqrt(jnp.float32(D))
    weight = jax.random.uniform(kw, (D, D), minval=-bound, maxval=bound,
                                dtype=jnp.float32)
    bias = jax.random.uniform(kb, (D,), minval=-bound, maxval=bound,
                              dtype=jnp.float32)

    out = jax.block_until_ready(hierarchical_substructure_forward(x, weight, bias))
    ref = _reference(x, weight, bias)
    assert out.shape == (B, S, D)
    assert jnp.allclose(out, ref, atol=1e-5, rtol=1e-5), "f32 mismatch vs reference"

    # ---- ragged feature dim (D not 128-aligned) -----------------------------
    B2, S2, D2 = 3, 70, 200
    kx2, kw2, kb2 = jax.random.split(jax.random.PRNGKey(1), 3)
    x2 = jax.random.normal(kx2, (B2, S2, D2), dtype=jnp.float32)
    bound2 = 1.0 / jnp.sqrt(jnp.float32(D2))
    w2 = jax.random.uniform(kw2, (D2, D2), minval=-bound2, maxval=bound2,
                            dtype=jnp.float32)
    b2_ = jax.random.uniform(kb2, (D2,), minval=-bound2, maxval=bound2,
                             dtype=jnp.float32)
    out2 = jax.block_until_ready(hierarchical_substructure_forward(x2, w2, b2_))
    ref2 = _reference(x2, w2, b2_)
    assert jnp.allclose(out2, ref2, atol=1e-4, rtol=1e-4), "ragged-D mismatch"

    # ---- multi-tile + ragged M (no M padding, masked last-block write) -----
    B3, S3, D3 = 5, 500, 128
    kx3, kw3, kb3 = jax.random.split(jax.random.PRNGKey(2), 3)
    x3 = jax.random.normal(kx3, (B3, S3, D3), dtype=jnp.float32)
    bound3 = 1.0 / jnp.sqrt(jnp.float32(D3))
    w3 = jax.random.uniform(kw3, (D3, D3), minval=-bound3, maxval=bound3,
                            dtype=jnp.float32)
    b3 = jax.random.uniform(kb3, (D3,), minval=-bound3, maxval=bound3,
                            dtype=jnp.float32)
    out3 = jax.block_until_ready(hierarchical_substructure_forward(x3, w3, b3))
    ref3 = _reference(x3, w3, b3)
    assert jnp.allclose(out3, ref3, atol=1e-4, rtol=1e-4), "ragged-M mismatch"

    # ---- bf16 input path (bf16 used only because x already arrives bf16) ---
    out_bf16 = jax.block_until_ready(
        hierarchical_substructure_forward(x.astype(jnp.bfloat16), weight, bias))
    assert out_bf16.dtype == jnp.bfloat16
    assert jnp.allclose(out_bf16.astype(jnp.float32), ref,
                        atol=5e-2, rtol=5e-2), "bf16 mismatch"

    # ---- large-D fallback path (weight too big to keep VMEM-resident) ------
    B4, S4, D4 = 2, 40, 1920
    kx4, kw4, kb4 = jax.random.split(jax.random.PRNGKey(3), 3)
    x4 = jax.random.normal(kx4, (B4, S4, D4), dtype=jnp.float32)
    bound4 = 1.0 / jnp.sqrt(jnp.float32(D4))
    w4 = jax.random.uniform(kw4, (D4, D4), minval=-bound4, maxval=bound4,
                            dtype=jnp.float32)
    b4 = jax.random.uniform(kb4, (D4,), minval=-bound4, maxval=bound4,
                            dtype=jnp.float32)
    out4 = jax.block_until_ready(hierarchical_substructure_forward(x4, w4, b4))
    ref4 = _reference(x4, w4, b4)
    assert jnp.allclose(out4, ref4, atol=1e-3, rtol=1e-3), "fallback-path mismatch"

    print("KERNEL_OK")
</pallas_src>

<mosaic_0001>
module attributes {stable_mosaic.version = 11 : i64} {
  func.func @_resident_linear_kernel(%arg0: i32, %arg1: memref<16x128xf32, #tpu.memory_space<vmem>>, %arg2: memref<128x128xf32, #tpu.memory_space<vmem>>, %arg3: memref<1x128xf32, #tpu.memory_space<vmem>>, %arg4: memref<16x128xf32, #tpu.memory_space<vmem>>) attributes {dimension_semantics = [#tpu.dimension_semantics<parallel>], iteration_bounds = array<i64: 1>, scalar_prefetch = 0 : i64, scratch_operands = 0 : i64, tpu.core_type = #tpu.core_type<tc>, window_params = [{transform_indices = @transform_0, window_bounds = array<i64: 16, 128>}, {pipeline_mode = #tpu.pipeline_mode<synchronous>, transform_indices = @transform_1, window_bounds = array<i64: 128, 128>}, {pipeline_mode = #tpu.pipeline_mode<synchronous>, transform_indices = @transform_2, window_bounds = array<i64: 1, 128>}, {transform_indices = @transform_3, window_bounds = array<i64: 16, 128>}]} {
    %c0 = arith.constant 0 : index
    %c0_0 = arith.constant 0 : index
    %0 = vector.load %arg1[%c0, %c0_0] : memref<16x128xf32, #tpu.memory_space<vmem>>, vector<16x128xf32>
    %c0_1 = arith.constant 0 : index
    %c0_2 = arith.constant 0 : index
    %1 = vector.load %arg2[%c0_1, %c0_2] : memref<128x128xf32, #tpu.memory_space<vmem>>, vector<128x128xf32>
    %cst = arith.constant dense<0.000000e+00> : vector<16x128xf32>
    %2 = tpu.matmul %0, %1, %cst {dimension_numbers = #tpu.dot_dimension_numbers<[1], [0], [0], [1], [0, 0, 1, 1], [], []>} : vector<16x128xf32>, vector<128x128xf32>, vector<16x128xf32> -> vector<16x128xf32>
    %c0_3 = arith.constant 0 : index
    %c0_4 = arith.constant 0 : index
    %3 = vector.load %arg3[%c0_3, %c0_4] : memref<1x128xf32, #tpu.memory_space<vmem>>, vector<1x128xf32>
    %4 = vector.broadcast %3 : vector<1x128xf32> to vector<16x128xf32>
    %5 = arith.addf %2, %4 : vector<16x128xf32>
    %c0_5 = arith.constant 0 : index
    %c0_6 = arith.constant 0 : index
    %6 = vector.load %arg4[%c0_5, %c0_6] : memref<16x128xf32, #tpu.memory_space<vmem>>, vector<16x128xf32>
    tpu.vector_store %arg4[%c0_5, %c0_6], %5 {strides = array<i32>} : memref<16x128xf32, #tpu.memory_space<vmem>>, vector<16x128xf32>,
    return
  }
  func.func @transform_0(%arg0: i32) -> (i32, i32) {
    %c0_i32 = arith.constant 0 : i32
    %c0_i32_0 = arith.constant 0 : i32
    return %arg0, %c0_i32 : i32, i32
  }
  func.func @transform_1(%arg0: i32) -> (i32, i32) {
    %c0_i32 = arith.constant 0 : i32
    %c0_i32_0 = arith.constant 0 : i32
    %c0_i32_1 = arith.constant 0 : i32
    return %c0_i32, %c0_i32_0 : i32, i32
  }
  func.func @transform_2(%arg0: i32) -> (i32, i32) {
    %c0_i32 = arith.constant 0 : i32
    %c0_i32_0 = arith.constant 0 : i32
    %c0_i32_1 = arith.constant 0 : i32
    return %c0_i32, %c0_i32_0 : i32, i32
  }
  func.func @transform_3(%arg0: i32) -> (i32, i32) {
    %c0_i32 = arith.constant 0 : i32
    %c0_i32_0 = arith.constant 0 : i32
    return %arg0, %c0_i32 : i32, i32
  }
}

module attributes {stable_mosaic.version = 11 : i64} {
  func.func @_resident_linear_kernel(%arg0: i32, %arg1: memref<16x128xf32, #tpu.memory_space<vmem>>, %arg2: memref<128x128xf32, #tpu.memory_space<vmem>>, %arg3: memref<1x128xf32, #tpu.memory_space<vmem>>, %arg4: memref<16x128xf32, #tpu.memory_space<vmem>>) attributes {dimension_semantics = [#tpu.dimension_semantics<parallel>], iteration_bounds = array<i64: 1>, scalar_prefetch = 0 : i64, scratch_operands = 0 : i64, tpu.core_type = #tpu.core_type<tc>, window_params = [{transform_indices = @transform_0, window_bounds = array<i64: 16, 128>}, {pipeline_mode = #tpu.pipeline_mode<synchronous>, transform_indices = @transform_1, window_bounds = array<i64: 128, 128>}, {pipeline_mode = #tpu.pipeline_mode<synchronous>, transform_indices = @transform_2, window_bounds = array<i64: 1, 128>}, {transform_indices = @transform_3, window_bounds = array<i64: 16, 128>}]} {
    %c0 = arith.constant 0 : index
    %c0_0 = arith.constant 0 : index
    %0 = vector.load %arg1[%c0, %c0_0] : memref<16x128xf32, #tpu.memory_space<vmem>>, vector<16x128xf32>
    %c0_1 = arith.constant 0 : index
    %c0_2 = arith.constant 0 : index
    %1 = vector.load %arg2[%c0_1, %c0_2] : memref<128x128xf32, #tpu.memory_space<vmem>>, vector<128x128xf32>
    %cst = arith.constant dense<0.000000e+00> : vector<16x128xf32>
    %2 = tpu.matmul %0, %1, %cst {dimension_numbers = #tpu.dot_dimension_numbers<[1], [0], [0], [1], [0, 0, 1, 1], [], []>} : vector<16x128xf32>, vector<128x128xf32>, vector<16x128xf32> -> vector<16x128xf32>
    %c0_3 = arith.constant 0 : index
    %c0_4 = arith.constant 0 : index
    %3 = vector.load %arg3[%c0_3, %c0_4] : memref<1x128xf32, #tpu.memory_space<vmem>>, vector<1x128xf32>
    %4 = vector.broadcast %3 : vector<1x128xf32> to vector<16x128xf32>
    %5 = arith.addf %2, %4 : vector<16x128xf32>
    %c0_5 = arith.constant 0 : index
    %c0_6 = arith.constant 0 : index
    %6 = vector.load %arg4[%c0_5, %c0_6] : memref<16x128xf32, #tpu.memory_space<vmem>>, vector<16x128xf32>
    tpu.vector_store %arg4[%c0_5, %c0_6], %5 {strides = array<i32>} : memref<16x128xf32, #tpu.memory_space<vmem>>, vector<16x128xf32>,
    return
  }
  func.func @transform_0(%arg0: i32) -> (i32, i32) {
    %c0_i32 = arith.constant 0 : i32
    %c0_i32_0 = arith.constant 0 : i32
    return %arg0, %c0_i32 : i32, i32
  }
  func.func @transform_1(%arg0: i32) -> (i32, i32) {
    %c0_i32 = arith.constant 0 : i32
    %c0_i32_0 = arith.constant 0 : i32
    %c0_i32_1 = arith.constant 0 : i32
    return %c0_i32, %c0_i32_0 : i32, i32
  }
  func.func @transform_2(%arg0: i32) -> (i32, i32) {
    %c0_i32 = arith.constant 0 : i32
    %c0_i32_0 = arith.constant 0 : i32
    %c0_i32_1 = arith.constant 0 : i32
    return %c0_i32, %c0_i32_0 : i32, i32
  }
  func.func @transform_3(%arg0: i32) -> (i32, i32) {
    %c0_i32 = arith.constant 0 : i32
    %c0_i32_0 = arith.constant 0 : i32
    return %arg0, %c0_i32 : i32, i32
  }
}

</mosaic_0001>

<llo_original>
// kernel: tpu_custom_call.1
$region0: #{tpu_custom_call.1}
  #allocation0 [shape = 'u32[]', space=smem, size = 0x4, offset = 0x4, fixed_abs, tag = 'smem constant byte address 0x4 - core index']
  #allocation1 [shape = 'u32[144,128]{1,0:T(1,128)}', space=vmem, size = 0x12000, scoped, tag = 'internal scratch']
  %s0 = inlined_call_operand.hbm [shape: f32[16,128], index: 0, kind: input, shape index: {}]
  %s1 = inlined_call_operand.hbm [shape: f32[128,128], index: 1, kind: input, shape index: {}]
  %s2 = inlined_call_operand.vmem [shape: f32[1,128], index: 2, kind: input, shape index: {}]
  %s3 = inlined_call_operand.hbm [shape: f32[16,128], index: 3, kind: output, shape index: {}]
  %s4 = sld [smem:[#allocation0]]
  $region30: #{tpu_custom_call.1} parent=0
    _
  %s6 = ssub.s32 1, %s4
  %s7 = scalar_select 0, %s6, %s4
  $region1: #{tpu_custom_call.1} parent=0
    #allocation2 [shape = 'u8[8192]{0}', space=vmem, size = 0x2000, scoped, tag = 'input window, operand 0, single buffered']
    #allocation3 [shape = 's32[1]{0}', space=sflag, size = 0x4, scoped, tag = 'scoped memory for tpu_custom_call.1']
    #allocation4 [shape = 's32[1]{0}', space=sflag, size = 0x4, scoped, tag = 'scoped memory for tpu_custom_call.1']
    #allocation5 [shape = 'u8[65536]{0}', space=vmem, size = 0x10000, scoped, tag = 'input window, operand 1, single buffered']
    #allocation6 [shape = 's32[1]{0}', space=sflag, size = 0x4, scoped, tag = 'scoped memory for tpu_custom_call.1']
    #allocation7 [shape = 'u8[8192]{0}', space=vmem, size = 0x2000, scoped, tag = 'output window, operand 0, single buffered']
    %8 = vsyncpa [#allocation3], 0
    %9 = vsyncpa [#allocation6], 0
    %10 = vsyncpa [#allocation4], 0
    // Predicated region
    $region2: #{tpu_custom_call.1} parent=1 // pred_check
      _
    $region3: #{tpu_custom_call.1} parent=1 // pred_check_branch
      %12 = sbr.rel (0) target = $region5
    $region4: #{tpu_custom_call.1} parent=1 // pred_region
      %s14 = ssub.s32 256, 256
      %15 = vsyncadd [#allocation3], %s14
      %s16 = sshll.u32 [#allocation2], 4
      %s17 = int_to_ptr.vmem [resolvable:$true] %s16
      %22 = dma.hbm_to_vmem [thread:$0]  %s0, 256, %s17, [#allocation3], 128, 128, 8
    $region5: #{tpu_custom_call.1} parent=1 // pred_fallthru
      _
    // Predicated region
    $region6: #{tpu_custom_call.1} parent=1 // pred_check
      _
    $region7: #{tpu_custom_call.1} parent=1 // pred_check_branch
      %24 = sbr.rel (0) target = $region9
    $region8: #{tpu_custom_call.1} parent=1 // pred_region
      %s26 = ssub.s32 2048, 2048
      %27 = vsyncadd [#allocation6], %s26
      %s28 = sshll.u32 [#allocation5], 4
      %s29 = int_to_ptr.vmem [resolvable:$true] %s28
      %34 = dma.hbm_to_vmem [thread:$0]  %s1, 2048, %s29, [#allocation6], 128, 128, 8
    $region9: #{tpu_custom_call.1} parent=1 // pred_fallthru
      _
    // Predicated region
    $region10: #{tpu_custom_call.1} parent=1 // pred_check
      _
    $region11: #{tpu_custom_call.1} parent=1 // pred_check_branch
      %36 = sbr.rel (0) target = $region13
    $region12: #{tpu_custom_call.1} parent=1 // pred_region
      _
    $region13: #{tpu_custom_call.1} parent=1 // pred_fallthru
      _
    // Predicated region
    $region14: #{tpu_custom_call.1} parent=1 // pred_check
      _
    $region15: #{tpu_custom_call.1} parent=1 // pred_check_branch
      %38 = sbr.rel (0) target = $region17
    $region16: #{tpu_custom_call.1} parent=1 // pred_region
      %39 = dma.done [#allocation3], 256
    $region17: #{tpu_custom_call.1} parent=1 // pred_fallthru
      _
    // Predicated region
    $region18: #{tpu_custom_call.1} parent=1 // pred_check
      _
    $region19: #{tpu_custom_call.1} parent=1 // pred_check_branch
      %41 = sbr.rel (0) target = $region21
    $region20: #{tpu_custom_call.1} parent=1 // pred_region
      %42 = dma.done [#allocation6], 2048
    $region21: #{tpu_custom_call.1} parent=1 // pred_fallthru
      _
    %v43 = vld [vmem:[#allocation2] sm:$0xff]
    %v44 = vld [vmem:[#allocation2 + $0x8] sm:$0xff]
    %v45 = vld [vmem:[#allocation5] sm:$0xff]
    %v46 = vld [vmem:[#allocation5 + $0x8] sm:$0xff]
    %v47 = vld [vmem:[#allocation5 + $0x10] sm:$0xff]
    %v48 = vld [vmem:[#allocation5 + $0x18] sm:$0xff]
    %v49 = vld [vmem:[#allocation5 + $0x20] sm:$0xff]
    %v50 = vld [vmem:[#allocation5 + $0x28] sm:$0xff]
    %v51 = vld [vmem:[#allocation5 + $0x30] sm:$0xff]
    %v52 = vld [vmem:[#allocation5 + $0x38] sm:$0xff]
    %v53 = vld [vmem:[#allocation5 + $0x40] sm:$0xff]
    %v54 = vld [vmem:[#allocation5 + $0x48] sm:$0xff]
    %v55 = vld [vmem:[#allocation5 + $0x50] sm:$0xff]
    %v56 = vld [vmem:[#allocation5 + $0x58] sm:$0xff]
    %v57 = vld [vmem:[#allocation5 + $0x60] sm:$0xff]
    %v58 = vld [vmem:[#allocation5 + $0x68] sm:$0xff]
    %v59 = vld [vmem:[#allocation5 + $0x70] sm:$0xff]
    %v60 = vld [vmem:[#allocation5 + $0x78] sm:$0xff]
    %v61 = vld [vmem:[%s2] sm:$0x1]
    %v63 = vlaneseq
    %v64 = vshrl.u32 %v63, 7
    %v65 = vsub.s32 0, %v64
    %v66 = vrot.slane %v61, %v65
    %68 = vmatprep.subr.mxu0 0.0
    %69 = vmatpush1.msra.mxu0 %v45
    %70 = vmatprep.subr.mxu0 0.0
    %71 = vmatpush1.msra.mxu0 %v46
    %72 = vmatprep.subr.mxu0 0.0
    %73 = vmatpush1.msra.mxu0 %v47
    %74 = vmatprep.subr.mxu0 0.0
    %75 = vmatpush1.msra.mxu0 %v48
    %76 = vmatprep.subr.mxu0 0.0
    %77 = vmatpush1.msra.mxu0 %v49
    %78 = vmatprep.subr.mxu0 0.0
    %79 = vmatpush1.msra.mxu0 %v50
    %80 = vmatprep.subr.mxu0 0.0
    %81 = vmatpush1.msra.mxu0 %v51
    %82 = vmatprep.subr.mxu0 0.0
    %83 = vmatpush1.msra.mxu0 %v52
    %84 = vmatprep.subr.mxu0 0.0
    %85 = vmatpush1.msra.mxu0 %v53
    %86 = vmatprep.subr.mxu0 0.0
    %87 = vmatpush1.msra.mxu0 %v54
    %88 = vmatprep.subr.mxu0 0.0
    %89 = vmatpush1.msra.mxu0 %v55
    %90 = vmatprep.subr.mxu0 0.0
    %91 = vmatpush1.msra.mxu0 %v56
    %92 = vmatprep.subr.mxu0 0.0
    %93 = vmatpush1.msra.mxu0 %v57
    %94 = vmatprep.subr.mxu0 0.0
    %95 = vmatpush1.msra.mxu0 %v58
    %96 = vmatprep.subr.mxu0 0.0
    %97 = vmatpush1.msra.mxu0 %v59
    %98 = vmatprep.subr.mxu0 0.0
    %99 = vmatpush1.msra.mxu0 %v60
    %100 = vmatprep.subr.mxu0 0.0
    %101 = vmatpush1.msra.mxu0 0.0
    %102 = vmatprep.subr.mxu0 0.0
    %103 = vmatpush1.msra.mxu0 0.0
    %104 = vmatprep.subr.mxu0 0.0
    %105 = vmatpush1.msra.mxu0 0.0
    %106 = vmatprep.subr.mxu0 0.0
    %107 = vmatpush1.msra.mxu0 0.0
    %108 = vmatprep.subr.mxu0 0.0
    %109 = vmatpush1.msra.mxu0 0.0
    %110 = vmatprep.subr.mxu0 0.0
    %111 = vmatpush1.msra.mxu0 0.0
    %112 = vmatprep.subr.mxu0 0.0
    %113 = vmatpush1.msra.mxu0 0.0
    %114 = vmatprep.subr.mxu0 0.0
    %115 = vmatpush1.msra.mxu0 0.0
    %116 = vmatprep.subr.mxu0 0.0
    %117 = vmatpush1.msra.mxu0 0.0
    %118 = vmatprep.subr.mxu0 0.0
    %119 = vmatpush1.msra.mxu0 0.0
    %120 = vmatprep.subr.mxu0 0.0
    %121 = vmatpush1.msra.mxu0 0.0
    %122 = vmatprep.subr.mxu0 0.0
    %123 = vmatpush1.msra.mxu0 0.0
    %124 = vmatprep.subr.mxu0 0.0
    %125 = vmatpush1.msra.mxu0 0.0
    %126 = vmatprep.subr.mxu0 0.0
    %127 = vmatpush1.msra.mxu0 0.0
    %128 = vmatprep.subr.mxu0 0.0
    %129 = vmatpush1.msra.mxu0 0.0
    %130 = vmatprep.subr.mxu0 0.0
    %131 = vmatpush1.msra.mxu0 0.0
    %132 = vmatprep.mubr.f32.mxu0 0.0
    %133 = vmatmul.mubr.f32.gmra.mrb[0].mxu0 %v43
    %v134 = vpop.f32.mrb[0].mxu0
    %v135 = vadd.f32 %v66, %v134
    %v136 = vpop.f32.mrb[0].mxu0
    %137 = vmatprep.mubr.f32.mxu0 0.0
    %138 = vmatmul.mubr.f32.gmra.mrb[0].mxu0 %v44
    %v139 = vpop.f32.mrb[0].mxu0
    %v140 = vadd.f32 %v66, %v139
    %v141 = vpop.f32.mrb[0].mxu0
    %142 = vdwg.mxu0
    %143 = vst [vmem:[#allocation7] sm:$0xff] %v135
    %144 = vst [vmem:[#allocation7 + $0x8] sm:$0xff] %v140
    // Predicated region
    $region22: #{tpu_custom_call.1} parent=1 // pred_check
      _
    $region23: #{tpu_custom_call.1} parent=1 // pred_check_branch
      %146 = sbr.rel (0) target = $region25
    $region24: #{tpu_custom_call.1} parent=1 // pred_region
      %s148 = ssub.s32 256, 256
      %149 = vsyncadd [#allocation4], %s148
      %s150 = sshll.u32 [#allocation7], 4
      %s151 = int_to_ptr.vmem [resolvable:$true] %s150
      %156 = dma.vmem_to_hbm [thread:$0]  %s151, 256, %s3, [#allocation4], 128, 128, 8
    $region25: #{tpu_custom_call.1} parent=1 // pred_fallthru
      _
    // Predicated region
    $region26: #{tpu_custom_call.1} parent=1 // pred_check
      _
    $region27: #{tpu_custom_call.1} parent=1 // pred_check_branch
      %158 = sbr.rel (0) target = $region29
    $region28: #{tpu_custom_call.1} parent=1 // pred_region
      %159 = dma.done [#allocation4], 256
    $region29: #{tpu_custom_call.1} parent=1 // pred_fallthru
      _
    %160 = vsyncpa [#allocation3], 1
    %161 = vsyncpa [#allocation6], 1
    %162 = vsyncpa [#allocation4], 1

// kernel: tpu_custom_call.1
$region0: #{tpu_custom_call.1}
  #allocation0 [shape = 'u32[]', space=smem, size = 0x4, offset = 0x4, fixed_abs, tag = 'smem constant byte address 0x4 - core index']
  #allocation1 [shape = 'u32[144,128]{1,0:T(1,128)}', space=vmem, size = 0x12000, scoped, tag = 'internal scratch']
  %s0 = inlined_call_operand.hbm [shape: f32[16,128], index: 0, kind: input, shape index: {}]
  %s1 = inlined_call_operand.hbm [shape: f32[128,128], index: 1, kind: input, shape index: {}]
  %s2 = inlined_call_operand.vmem [shape: f32[1,128], index: 2, kind: input, shape index: {}]
  %s3 = inlined_call_operand.hbm [shape: f32[16,128], index: 3, kind: output, shape index: {}]
  %s4 = sld [smem:[#allocation0]]
  $region30: #{tpu_custom_call.1} parent=0
    _
  %s6 = ssub.s32 1, %s4
  %s7 = scalar_select 0, %s6, %s4
  $region1: #{tpu_custom_call.1} parent=0
    #allocation2 [shape = 'u8[8192]{0}', space=vmem, size = 0x2000, scoped, tag = 'input window, operand 0, single buffered']
    #allocation3 [shape = 's32[1]{0}', space=sflag, size = 0x4, scoped, tag = 'scoped memory for tpu_custom_call.1']
    #allocation4 [shape = 's32[1]{0}', space=sflag, size = 0x4, scoped, tag = 'scoped memory for tpu_custom_call.1']
    #allocation5 [shape = 'u8[65536]{0}', space=vmem, size = 0x10000, scoped, tag = 'input window, operand 1, single buffered']
    #allocation6 [shape = 's32[1]{0}', space=sflag, size = 0x4, scoped, tag = 'scoped memory for tpu_custom_call.1']
    #allocation7 [shape = 'u8[8192]{0}', space=vmem, size = 0x2000, scoped, tag = 'output window, operand 0, single buffered']
    %8 = vsyncpa [#allocation3], 0
    %9 = vsyncpa [#allocation6], 0
    %10 = vsyncpa [#allocation4], 0
    // Predicated region
    $region2: #{tpu_custom_call.1} parent=1 // pred_check
      _
    $region3: #{tpu_custom_call.1} parent=1 // pred_check_branch
      %12 = sbr.rel (0) target = $region5
    $region4: #{tpu_custom_call.1} parent=1 // pred_region
      %s14 = ssub.s32 256, 256
      %15 = vsyncadd [#allocation3], %s14
      %s16 = sshll.u32 [#allocation2], 4
      %s17 = int_to_ptr.vmem [resolvable:$true] %s16
      %22 = dma.hbm_to_vmem [thread:$0]  %s0, 256, %s17, [#allocation3], 128, 128, 8
    $region5: #{tpu_custom_call.1} parent=1 // pred_fallthru
      _
    // Predicated region
    $region6: #{tpu_custom_call.1} parent=1 // pred_check
      _
    $region7: #{tpu_custom_call.1} parent=1 // pred_check_branch
      %24 = sbr.rel (0) target = $region9
    $region8: #{tpu_custom_call.1} parent=1 // pred_region
      %s26 = ssub.s32 2048, 2048
      %27 = vsyncadd [#allocation6], %s26
      %s28 = sshll.u32 [#allocation5], 4
      %s29 = int_to_ptr.vmem [resolvable:$true] %s28
      %34 = dma.hbm_to_vmem [thread:$0]  %s1, 2048, %s29, [#allocation6], 128, 128, 8
    $region9: #{tpu_custom_call.1} parent=1 // pred_fallthru
      _
    // Predicated region
    $region10: #{tpu_custom_call.1} parent=1 // pred_check
      _
    $region11: #{tpu_custom_call.1} parent=1 // pred_check_branch
      %36 = sbr.rel (0) target = $region13
    $region12: #{tpu_custom_call.1} parent=1 // pred_region
      _
    $region13: #{tpu_custom_call.1} parent=1 // pred_fallthru
      _
    // Predicated region
    $region14: #{tpu_custom_call.1} parent=1 // pred_check
      _
    $region15: #{tpu_custom_call.1} parent=1 // pred_check_branch
      %38 = sbr.rel (0) target = $region17
    $region16: #{tpu_custom_call.1} parent=1 // pred_region
      %39 = dma.done [#allocation3], 256
    $region17: #{tpu_custom_call.1} parent=1 // pred_fallthru
      _
    // Predicated region
    $region18: #{tpu_custom_call.1} parent=1 // pred_check
      _
    $region19: #{tpu_custom_call.1} parent=1 // pred_check_branch
      %41 = sbr.rel (0) target = $region21
    $region20: #{tpu_custom_call.1} parent=1 // pred_region
      %42 = dma.done [#allocation6], 2048
    $region21: #{tpu_custom_call.1} parent=1 // pred_fallthru
      _
    %v43 = vld [vmem:[#allocation2] sm:$0xff]
    %v44 = vld [vmem:[#allocation2 + $0x8] sm:$0xff]
    %v45 = vld [vmem:[#allocation5] sm:$0xff]
    %v46 = vld [vmem:[#allocation5 + $0x8] sm:$0xff]
    %v47 = vld [vmem:[#allocation5 + $0x10] sm:$0xff]
    %v48 = vld [vmem:[#allocation5 + $0x18] sm:$0xff]
    %v49 = vld [vmem:[#allocation5 + $0x20] sm:$0xff]
    %v50 = vld [vmem:[#allocation5 + $0x28] sm:$0xff]
    %v51 = vld [vmem:[#allocation5 + $0x30] sm:$0xff]
    %v52 = vld [vmem:[#allocation5 + $0x38] sm:$0xff]
    %v53 = vld [vmem:[#allocation5 + $0x40] sm:$0xff]
    %v54 = vld [vmem:[#allocation5 + $0x48] sm:$0xff]
    %v55 = vld [vmem:[#allocation5 + $0x50] sm:$0xff]
    %v56 = vld [vmem:[#allocation5 + $0x58] sm:$0xff]
    %v57 = vld [vmem:[#allocation5 + $0x60] sm:$0xff]
    %v58 = vld [vmem:[#allocation5 + $0x68] sm:$0xff]
    %v59 = vld [vmem:[#allocation5 + $0x70] sm:$0xff]
    %v60 = vld [vmem:[#allocation5 + $0x78] sm:$0xff]
    %v61 = vld [vmem:[%s2] sm:$0x1]
    %v63 = vlaneseq
    %v64 = vshrl.u32 %v63, 7
    %v65 = vsub.s32 0, %v64
    %v66 = vrot.slane %v61, %v65
    %68 = vmatprep.subr.mxu0 0.0
    %69 = vmatpush1.msra.mxu0 %v45
    %70 = vmatprep.subr.mxu0 0.0
    %71 = vmatpush1.msra.mxu0 %v46
    %72 = vmatprep.subr.mxu0 0.0
    %73 = vmatpush1.msra.mxu0 %v47
    %74 = vmatprep.subr.mxu0 0.0
    %75 = vmatpush1.msra.mxu0 %v48
    %76 = vmatprep.subr.mxu0 0.0
    %77 = vmatpush1.msra.mxu0 %v49
    %78 = vmatprep.subr.mxu0 0.0
    %79 = vmatpush1.msra.mxu0 %v50
    %80 = vmatprep.subr.mxu0 0.0
    %81 = vmatpush1.msra.mxu0 %v51
    %82 = vmatprep.subr.mxu0 0.0
    %83 = vmatpush1.msra.mxu0 %v52
    %84 = vmatprep.subr.mxu0 0.0
    %85 = vmatpush1.msra.mxu0 %v53
    %86 = vmatprep.subr.mxu0 0.0
    %87 = vmatpush1.msra.mxu0 %v54
    %88 = vmatprep.subr.mxu0 0.0
    %89 = vmatpush1.msra.mxu0 %v55
    %90 = vmatprep.subr.mxu0 0.0
    %91 = vmatpush1.msra.mxu0 %v56
    %92 = vmatprep.subr.mxu0 0.0
    %93 = vmatpush1.msra.mxu0 %v57
    %94 = vmatprep.subr.mxu0 0.0
    %95 = vmatpush1.msra.mxu0 %v58
    %96 = vmatprep.subr.mxu0 0.0
    %97 = vmatpush1.msra.mxu0 %v59
    %98 = vmatprep.subr.mxu0 0.0
    %99 = vmatpush1.msra.mxu0 %v60
    %100 = vmatprep.subr.mxu0 0.0
    %101 = vmatpush1.msra.mxu0 0.0
    %102 = vmatprep.subr.mxu0 0.0
    %103 = vmatpush1.msra.mxu0 0.0
    %104 = vmatprep.subr.mxu0 0.0
    %105 = vmatpush1.msra.mxu0 0.0
    %106 = vmatprep.subr.mxu0 0.0
    %107 = vmatpush1.msra.mxu0 0.0
    %108 = vmatprep.subr.mxu0 0.0
    %109 = vmatpush1.msra.mxu0 0.0
    %110 = vmatprep.subr.mxu0 0.0
    %111 = vmatpush1.msra.mxu0 0.0
    %112 = vmatprep.subr.mxu0 0.0
    %113 = vmatpush1.msra.mxu0 0.0
    %114 = vmatprep.subr.mxu0 0.0
    %115 = vmatpush1.msra.mxu0 0.0
    %116 = vmatprep.subr.mxu0 0.0
    %117 = vmatpush1.msra.mxu0 0.0
    %118 = vmatprep.subr.mxu0 0.0
    %119 = vmatpush1.msra.mxu0 0.0
    %120 = vmatprep.subr.mxu0 0.0
    %121 = vmatpush1.msra.mxu0 0.0
    %122 = vmatprep.subr.mxu0 0.0
    %123 = vmatpush1.msra.mxu0 0.0
    %124 = vmatprep.subr.mxu0 0.0
    %125 = vmatpush1.msra.mxu0 0.0
    %126 = vmatprep.subr.mxu0 0.0
    %127 = vmatpush1.msra.mxu0 0.0
    %128 = vmatprep.subr.mxu0 0.0
    %129 = vmatpush1.msra.mxu0 0.0
    %130 = vmatprep.subr.mxu0 0.0
    %131 = vmatpush1.msra.mxu0 0.0
    %132 = vmatprep.mubr.f32.mxu0 0.0
    %133 = vmatmul.mubr.f32.gmra.mrb[0].mxu0 %v43
    %v134 = vpop.f32.mrb[0].mxu0
    %v135 = vadd.f32 %v66, %v134
    %v136 = vpop.f32.mrb[0].mxu0
    %137 = vmatprep.mubr.f32.mxu0 0.0
    %138 = vmatmul.mubr.f32.gmra.mrb[0].mxu0 %v44
    %v139 = vpop.f32.mrb[0].mxu0
    %v140 = vadd.f32 %v66, %v139
    %v141 = vpop.f32.mrb[0].mxu0
    %142 = vdwg.mxu0
    %143 = vst [vmem:[#allocation7] sm:$0xff] %v135
    %144 = vst [vmem:[#allocation7 + $0x8] sm:$0xff] %v140
    // Predicated region
    $region22: #{tpu_custom_call.1} parent=1 // pred_check
      _
    $region23: #{tpu_custom_call.1} parent=1 // pred_check_branch
      %146 = sbr.rel (0) target = $region25
    $region24: #{tpu_custom_call.1} parent=1 // pred_region
      %s148 = ssub.s32 256, 256
      %149 = vsyncadd [#allocation4], %s148
      %s150 = sshll.u32 [#allocation7], 4
      %s151 = int_to_ptr.vmem [resolvable:$true] %s150
      %156 = dma.vmem_to_hbm [thread:$0]  %s151, 256, %s3, [#allocation4], 128, 128, 8
    $region25: #{tpu_custom_call.1} parent=1 // pred_fallthru
      _
    // Predicated region
    $region26: #{tpu_custom_call.1} parent=1 // pred_check
      _
    $region27: #{tpu_custom_call.1} parent=1 // pred_check_branch
      %158 = sbr.rel (0) target = $region29
    $region28: #{tpu_custom_call.1} parent=1 // pred_region
      %159 = dma.done [#allocation4], 256
    $region29: #{tpu_custom_call.1} parent=1 // pred_fallthru
      _
    %160 = vsyncpa [#allocation3], 1
    %161 = vsyncpa [#allocation6], 1
    %162 = vsyncpa [#allocation4], 1

</llo_original>
